<compile_context>
chip_gen: v7x
topology: tpu7x:2x2x1
jax: 0.10.0
libtpu: 0.0.40
codegen_flags: <defaults>
</compile_context>

<pallas_src>
import jax
import jax.numpy as jnp
from jax.experimental import pallas as pl
from jax.experimental.pallas import tpu as pltpu


_SAMPLES_PER_ROW = 32      # 32 samples * 4 features = 128 lanes (one vreg row)
_IN_FEATURES = 4
_HIDDEN = 10
_CLASSES = 2
_X_LANES = _SAMPLES_PER_ROW * _IN_FEATURES    # 128
_H_LANES = _SAMPLES_PER_ROW * _HIDDEN         # 320
_O_LANES = _SAMPLES_PER_ROW * _CLASSES        # 64


def _mlp_logsoftmax_kernel(x_ref, w1b_ref, b1b_ref, w2db_ref, b2db_ref, o_ref):
    """Packed-lane MLP + 2-class log-softmax.

    x_ref   : (TR, 128)  row r, lane 4*s+f  <-> sample 32*r+s, feature f
    w1b_ref : (128, 320) block-diag replicated fc1 weights (col 10*s+j)
    b1b_ref : (1, 320)
    w2db_ref: (320, 64)  block-diag replicated (fc2[0]-fc2[1]) (col 2*s+c)
    b2db_ref: (1, 64)
    o_ref   : (TR, 64)   row r, lane 2*s+c  <-> sample 32*r+s, class c
    """
    x = x_ref[...]                                                       # (TR, 128)
    # fc1 + ReLU: one 128-deep contraction on the MXU.
    h = jnp.dot(x, w1b_ref[...], preferred_element_type=jnp.float32)    # (TR, 320)
    h = jnp.maximum(h + b1b_ref[...], 0.0)
    # Only the logit difference d = logit0 - logit1 matters for a 2-class
    # log-softmax; it arrives replicated at both class lanes of each pair.
    d = jnp.dot(h, w2db_ref[...],
                preferred_element_type=jnp.float32) + b2db_ref[...]      # (TR, 64)
    # softplus(d) = max(d, 0) + log(1 + exp(-|d|))  (numerically stable)
    sp = jnp.maximum(d, 0.0) + jnp.log(1.0 + jnp.exp(-jnp.abs(d)))
    lane = jax.lax.broadcasted_iota(jnp.int32, d.shape, 1)
    is_class0 = (lane & 1) == 0
    # log_softmax: class 0 -> d - softplus(d), class 1 -> -softplus(d)
    o_ref[...] = jnp.where(is_class0, d - sp, -sp)


def _round_up(a, b):
    return ((a + b - 1) // b) * b


def _vmem_capacity_bytes():
    try:
        cap = getattr(pltpu.get_tpu_info(), "vmem_capacity_bytes", None)
        if cap:
            return int(cap)
    except Exception:
        pass
    return 64 * 1024 * 1024   # conservative (v7x-sized) fallback


def _pack_params(w1, b1, w2, b2):
    """Build block-diagonal replicated weights for the packed-lane layout."""
    w1 = w1.astype(jnp.float32)                       # (10, 4)
    b1 = jnp.reshape(b1, (-1,)).astype(jnp.float32)   # (10,)
    w2 = w2.astype(jnp.float32)                       # (2, 10)
    b2 = jnp.reshape(b2, (-1,)).astype(jnp.float32)   # (2,)
    eye = jnp.eye(_SAMPLES_PER_ROW, dtype=jnp.float32)
    # W1b[4*s+f, 10*t+j] = [s == t] * w1[j, f]
    w1b = jnp.einsum("st,jf->sftj", eye, w1).reshape(_X_LANES, _H_LANES)
    b1b = jnp.tile(b1, _SAMPLES_PER_ROW).reshape(1, _H_LANES)
    # Only the logit difference is needed for the 2-class log-softmax.
    w2d = w2[0] - w2[1]                                        # (10,)
    w2db = jnp.einsum("ts,j->tjs", eye, w2d)                   # (32, 10, 32)
    w2db = jnp.repeat(w2db[:, :, :, None], _CLASSES, axis=3)   # (32, 10, 32, 2)
    w2db = w2db.reshape(_H_LANES, _O_LANES)
    b2db = jnp.full((1, _O_LANES), b2[0] - b2[1], jnp.float32)
    return w1b, b1b, w2db, b2db


def net_forward(x, w1, b1, w2, b2):
    """x: any shape with prod % 4 == 0; weights in PyTorch (out, in) layout.

    w1: (10, 4), b1: (10,), w2: (2, 10), b2: (2,).
    Returns (N, 2) log-probabilities (float32).
    """
    x2d = jnp.reshape(x, (-1, _IN_FEATURES)).astype(jnp.float32)
    n = x2d.shape[0]
    n_pad = _round_up(n, _SAMPLES_PER_ROW)
    if n_pad != n:
        # Only the ragged tail (< 32 samples) is padded; when n % 32 == 0 the
        # packed reshape below is a zero-copy bitcast of the row-major input.
        x2d = jnp.pad(x2d, ((0, n_pad - n), (0, 0)))
    rows = n_pad // _SAMPLES_PER_ROW
    x_packed = jnp.reshape(x2d, (rows, _X_LANES))

    w1b, b1b, w2db, b2db = _pack_params(w1, b1, w2, b2)

    # Chip-aware tile sizing: 8192 packed rows (256K samples) on 128-MiB-VMEM
    # chips (v5e/v6e), 4096 rows (128K samples) otherwise (v7x has 64 MiB).
    if _vmem_capacity_bytes() >= 100 * 1024 * 1024:
        tr_max, vmem_limit = 8192, 96 * 1024 * 1024
    else:
        tr_max, vmem_limit = 4096, 40 * 1024 * 1024

    if rows <= 2048:
        tr = rows                                     # single resident block
    else:
        # >= 2 grid steps so ("parallel",) can split across v7x's 2 TCs; cap
        # so the double-buffered pipeline fits comfortably in VMEM.
        tr = min(tr_max, _round_up(pl.cdiv(rows, 2), 8))
    grid = (pl.cdiv(rows, tr),)

    out_packed = pl.pallas_call(
        _mlp_logsoftmax_kernel,
        out_shape=jax.ShapeDtypeStruct((rows, _O_LANES), jnp.float32),
        grid=grid,
        in_specs=[
            pl.BlockSpec((tr, _X_LANES), lambda i: (i, 0)),   # packed x tile
            pl.BlockSpec(w1b.shape, lambda i: (0, 0)),        # resident weights
            pl.BlockSpec(b1b.shape, lambda i: (0, 0)),
            pl.BlockSpec(w2db.shape, lambda i: (0, 0)),
            pl.BlockSpec(b2db.shape, lambda i: (0, 0)),
        ],
        out_specs=pl.BlockSpec((tr, _O_LANES), lambda i: (i, 0)),
        compiler_params=pltpu.CompilerParams(
            dimension_semantics=("parallel",),
            vmem_limit_bytes=vmem_limit,
        ),
    )(x_packed, w1b, b1b, w2db, b2db)

    # (rows, 64) row-major is bit-identical to (n_pad, 2) row-major.
    out = jnp.reshape(out_packed, (n_pad, _CLASSES))
    return out[:n] if n_pad != n else out


def init_params(key):
    """Deterministic params matching nn.Linear default init (U[+/- 1/sqrt(fan_in)]).

    Stored in PyTorch (out_features, in_features) layout.
    """
    k1, k2, k3, k4 = jax.random.split(key, 4)
    bound1 = 1.0 / jnp.sqrt(4.0)
    bound2 = 1.0 / jnp.sqrt(10.0)
    w1 = jax.random.uniform(k1, (10, 4), jnp.float32, -bound1, bound1)
    b1 = jax.random.uniform(k2, (10,), jnp.float32, -bound1, bound1)
    w2 = jax.random.uniform(k3, (2, 10), jnp.float32, -bound2, bound2)
    b2 = jax.random.uniform(k4, (2,), jnp.float32, -bound2, bound2)
    return w1, b1, w2, b2


if __name__ == "__main__":
    key = jax.random.PRNGKey(0)
    k_params, k_x = jax.random.split(key)
    w1, b1, w2, b2 = init_params(k_params)

    # Small input; forward's view(-1, 4) flattens (2, 4, 16, 16) -> (512, 4).
    x = jax.random.normal(k_x, (2, 4, 16, 16), dtype=jnp.float32)

    out = net_forward(x, w1, b1, w2, b2)
    out = jax.block_until_ready(out)

    # Shape / normalization sanity: rows exponentiate to probs summing to 1.
    assert out.shape == (512, 2), out.shape
    row_sums = jnp.sum(jnp.exp(out), axis=1)
    assert jnp.allclose(row_sums, 1.0, atol=1e-5)

    # Cross-check against a plain-JAX reference of the same forward pass.
    x2d = jnp.reshape(x, (-1, 4)).astype(jnp.float32)
    ref_h = jnp.maximum(x2d @ w1.T + b1, 0.0)
    ref_logits = ref_h @ w2.T + b2
    ref = jax.nn.log_softmax(ref_logits, axis=-1)
    assert jnp.allclose(out, ref, atol=2e-5), float(jnp.max(jnp.abs(out - ref)))

    print("KERNEL_OK")
</pallas_src>

<mosaic_0001>
module attributes {stable_mosaic.version = 11 : i64} {
  func.func @_mlp_logsoftmax_kernel(%arg0: i32, %arg1: memref<16x128xf32, #tpu.memory_space<vmem>>, %arg2: memref<128x320xf32, #tpu.memory_space<vmem>>, %arg3: memref<1x320xf32, #tpu.memory_space<vmem>>, %arg4: memref<320x64xf32, #tpu.memory_space<vmem>>, %arg5: memref<1x64xf32, #tpu.memory_space<vmem>>, %arg6: memref<16x64xf32, #tpu.memory_space<vmem>>) attributes {dimension_semantics = [#tpu.dimension_semantics<parallel>], iteration_bounds = array<i64: 1>, scalar_prefetch = 0 : i64, scratch_operands = 0 : i64, tpu.core_type = #tpu.core_type<tc>, window_params = [{transform_indices = @transform_0, window_bounds = array<i64: 16, 128>}, {pipeline_mode = #tpu.pipeline_mode<synchronous>, transform_indices = @transform_1, window_bounds = array<i64: 128, 320>}, {pipeline_mode = #tpu.pipeline_mode<synchronous>, transform_indices = @transform_2, window_bounds = array<i64: 1, 320>}, {pipeline_mode = #tpu.pipeline_mode<synchronous>, transform_indices = @transform_3, window_bounds = array<i64: 320, 64>}, {pipeline_mode = #tpu.pipeline_mode<synchronous>, transform_indices = @transform_4, window_bounds = array<i64: 1, 64>}, {transform_indices = @transform_5, window_bounds = array<i64: 16, 64>}]} {
    %c0 = arith.constant 0 : index
    %c0_0 = arith.constant 0 : index
    %0 = vector.load %arg1[%c0, %c0_0] : memref<16x128xf32, #tpu.memory_space<vmem>>, vector<16x128xf32>
    %c0_1 = arith.constant 0 : index
    %c0_2 = arith.constant 0 : index
    %1 = vector.load %arg2[%c0_1, %c0_2] : memref<128x320xf32, #tpu.memory_space<vmem>>, vector<128x320xf32>
    %cst = arith.constant dense<0.000000e+00> : vector<16x320xf32>
    %2 = tpu.matmul %0, %1, %cst {dimension_numbers = #tpu.dot_dimension_numbers<[1], [0], [0], [1], [0, 0, 1, 1], [], []>} : vector<16x128xf32>, vector<128x320xf32>, vector<16x320xf32> -> vector<16x320xf32>
    %c0_3 = arith.constant 0 : index
    %c0_4 = arith.constant 0 : index
    %3 = vector.load %arg3[%c0_3, %c0_4] : memref<1x320xf32, #tpu.memory_space<vmem>>, vector<1x320xf32>
    %4 = vector.broadcast %3 : vector<1x320xf32> to vector<16x320xf32>
    %5 = arith.addf %2, %4 : vector<16x320xf32>
    %cst_5 = arith.constant 0.000000e+00 : f32
    %6 = vector.broadcast %cst_5 : f32 to vector<16x320xf32>
    %7 = arith.maximumf %5, %6 : vector<16x320xf32>
    %c0_6 = arith.constant 0 : index
    %c0_7 = arith.constant 0 : index
    %8 = vector.load %arg4[%c0_6, %c0_7] : memref<320x64xf32, #tpu.memory_space<vmem>>, vector<320x64xf32>
    %cst_8 = arith.constant dense<0.000000e+00> : vector<16x64xf32>
    %9 = tpu.matmul %7, %8, %cst_8 {dimension_numbers = #tpu.dot_dimension_numbers<[1], [0], [0], [1], [0, 0, 1, 1], [], []>} : vector<16x320xf32>, vector<320x64xf32>, vector<16x64xf32> -> vector<16x64xf32>
    %c0_9 = arith.constant 0 : index
    %c0_10 = arith.constant 0 : index
    %10 = vector.load %arg5[%c0_9, %c0_10] : memref<1x64xf32, #tpu.memory_space<vmem>>, vector<1x64xf32>
    %11 = vector.broadcast %10 : vector<1x64xf32> to vector<16x64xf32>
    %12 = arith.addf %9, %11 : vector<16x64xf32>
    %cst_11 = arith.constant 0.000000e+00 : f32
    %13 = vector.broadcast %cst_11 : f32 to vector<16x64xf32>
    %14 = arith.maximumf %12, %13 : vector<16x64xf32>
    %15 = math.absf %12 : vector<16x64xf32>
    %cst_12 = arith.constant 0.000000e+00 : f32
    %16 = vector.broadcast %cst_12 : f32 to vector<16x64xf32>
    %17 = arith.subf %16, %15 : vector<16x64xf32>
    %18 = math.exp %17 : vector<16x64xf32>
    %cst_13 = arith.constant 1.000000e+00 : f32
    %19 = vector.broadcast %cst_13 : f32 to vector<16x64xf32>
    %20 = arith.addf %19, %18 : vector<16x64xf32>
    %21 = math.log %20 : vector<16x64xf32>
    %22 = arith.addf %14, %21 : vector<16x64xf32>
    %23 = tpu.iota {dimensions = array<i32: 1>} : vector<16x64xi32>
    %c1_i32 = arith.constant 1 : i32
    %24 = vector.broadcast %c1_i32 : i32 to vector<16x64xi32>
    %25 = arith.andi %23, %24 : vector<16x64xi32>
    %c0_i32 = arith.constant 0 : i32
    %26 = vector.broadcast %c0_i32 : i32 to vector<16x64xi32>
    %27 = arith.cmpi eq, %25, %26 : vector<16x64xi32>
    %28 = arith.subf %12, %22 : vector<16x64xf32>
    %cst_14 = arith.constant 0.000000e+00 : f32
    %29 = vector.broadcast %cst_14 : f32 to vector<16x64xf32>
    %30 = arith.subf %29, %22 : vector<16x64xf32>
    %31 = arith.select %27, %28, %30 : vector<16x64xi1>, vector<16x64xf32>
    %c0_15 = arith.constant 0 : index
    %c0_16 = arith.constant 0 : index
    %32 = vector.load %arg6[%c0_15, %c0_16] : memref<16x64xf32, #tpu.memory_space<vmem>>, vector<16x64xf32>
    tpu.vector_store %arg6[%c0_15, %c0_16], %31 {strides = array<i32>} : memref<16x64xf32, #tpu.memory_space<vmem>>, vector<16x64xf32>,
    return
  }
  func.func @transform_0(%arg0: i32) -> (i32, i32) {
    %c0_i32 = arith.constant 0 : i32
    %c0_i32_0 = arith.constant 0 : i32
    return %arg0, %c0_i32 : i32, i32
  }
  func.func @transform_1(%arg0: i32) -> (i32, i32) {
    %c0_i32 = arith.constant 0 : i32
    %c0_i32_0 = arith.constant 0 : i32
    %c0_i32_1 = arith.constant 0 : i32
    return %c0_i32, %c0_i32_0 : i32, i32
  }
  func.func @transform_2(%arg0: i32) -> (i32, i32) {
    %c0_i32 = arith.constant 0 : i32
    %c0_i32_0 = arith.constant 0 : i32
    %c0_i32_1 = arith.constant 0 : i32
    return %c0_i32, %c0_i32_0 : i32, i32
  }
  func.func @transform_3(%arg0: i32) -> (i32, i32) {
    %c0_i32 = arith.constant 0 : i32
    %c0_i32_0 = arith.constant 0 : i32
    %c0_i32_1 = arith.constant 0 : i32
    return %c0_i32, %c0_i32_0 : i32, i32
  }
  func.func @transform_4(%arg0: i32) -> (i32, i32) {
    %c0_i32 = arith.constant 0 : i32
    %c0_i32_0 = arith.constant 0 : i32
    %c0_i32_1 = arith.constant 0 : i32
    return %c0_i32, %c0_i32_0 : i32, i32
  }
  func.func @transform_5(%arg0: i32) -> (i32, i32) {
    %c0_i32 = arith.constant 0 : i32
    %c0_i32_0 = arith.constant 0 : i32
    return %arg0, %c0_i32 : i32, i32
  }
}

</mosaic_0001>

<llo_original>
// kernel: tpu_custom_call.1
$region0: #{tpu_custom_call.1}
  #allocation0 [shape = 'u32[]', space=smem, size = 0x4, offset = 0x4, fixed_abs, tag = 'smem constant byte address 0x4 - core index']
  #allocation1 [shape = 'u32[144,128]{1,0:T(1,128)}', space=vmem, size = 0x12000, scoped, tag = 'internal scratch']
  %s0 = inlined_call_operand.vmem [shape: f32[16,128], index: 0, kind: input, shape index: {}]
  %s1 = inlined_call_operand.vmem [shape: f32[128,320], index: 1, kind: input, shape index: {}]
  %s2 = inlined_call_operand.vmem [shape: f32[1,320], index: 2, kind: input, shape index: {}]
  %s3 = inlined_call_operand.vmem [shape: f32[320,64], index: 3, kind: input, shape index: {}]
  %s4 = inlined_call_operand.vmem [shape: f32[1,64], index: 4, kind: input, shape index: {}]
  %s5 = inlined_call_operand.hbm [shape: f32[16,64], index: 5, kind: output, shape index: {}]
  %s6 = sld [smem:[#allocation0]]
  $region30: #{tpu_custom_call.1} parent=0
    _
  %s8 = ssub.s32 1, %s6
  %s9 = scalar_select 0, %s8, %s6
  $region1: #{tpu_custom_call.1} parent=0
    #allocation2 [shape = 'u8[8192]{0}', space=vmem, size = 0x2000, scoped, tag = 'output window, operand 0, single buffered']
    #allocation3 [shape = 's32[1]{0}', space=sflag, size = 0x4, scoped, tag = 'scoped memory for tpu_custom_call.1']
    %10 = vsyncpa [#allocation3], 0
    // Predicated region
    $region2: #{tpu_custom_call.1} parent=1 // pred_check
      _
    $region3: #{tpu_custom_call.1} parent=1 // pred_check_branch
      %12 = sbr.rel (0) target = $region5
    $region4: #{tpu_custom_call.1} parent=1 // pred_region
      _
    $region5: #{tpu_custom_call.1} parent=1 // pred_fallthru
      _
    // Predicated region
    $region6: #{tpu_custom_call.1} parent=1 // pred_check
      _
    $region7: #{tpu_custom_call.1} parent=1 // pred_check_branch
      %14 = sbr.rel (0) target = $region9
    $region8: #{tpu_custom_call.1} parent=1 // pred_region
      _
    $region9: #{tpu_custom_call.1} parent=1 // pred_fallthru
      _
    // Predicated region
    $region10: #{tpu_custom_call.1} parent=1 // pred_check
      _
    $region11: #{tpu_custom_call.1} parent=1 // pred_check_branch
      %16 = sbr.rel (0) target = $region13
    $region12: #{tpu_custom_call.1} parent=1 // pred_region
      _
    $region13: #{tpu_custom_call.1} parent=1 // pred_fallthru
      _
    // Predicated region
    $region14: #{tpu_custom_call.1} parent=1 // pred_check
      _
    $region15: #{tpu_custom_call.1} parent=1 // pred_check_branch
      %18 = sbr.rel (0) target = $region17
    $region16: #{tpu_custom_call.1} parent=1 // pred_region
      _
    $region17: #{tpu_custom_call.1} parent=1 // pred_fallthru
      _
    // Predicated region
    $region18: #{tpu_custom_call.1} parent=1 // pred_check
      _
    $region19: #{tpu_custom_call.1} parent=1 // pred_check_branch
      %20 = sbr.rel (0) target = $region21
    $region20: #{tpu_custom_call.1} parent=1 // pred_region
      _
    $region21: #{tpu_custom_call.1} parent=1 // pred_fallthru
      _
    %v21 = vld [vmem:[%s0] sm:$0xff]
    %v22 = vld [vmem:[%s0 + $0x8] sm:$0xff]
    %v23 = vld [vmem:[%s1] sm:$0xff]
    %v24 = vld [vmem:[%s1 + $0x8] sm:$0xff]
    %v25 = vld [vmem:[%s1 + $0x10] sm:$0xff]
    %v26 = vld [vmem:[%s1 + $0x18] sm:$0xff]
    %v27 = vld [vmem:[%s1 + $0x20] sm:$0xff]
    %v28 = vld [vmem:[%s1 + $0x28] sm:$0xff]
    %v29 = vld [vmem:[%s1 + $0x30] sm:$0xff]
    %v30 = vld [vmem:[%s1 + $0x38] sm:$0xff]
    %v31 = vld [vmem:[%s1 + $0x40] sm:$0xff]
    %v32 = vld [vmem:[%s1 + $0x48] sm:$0xff]
    %v33 = vld [vmem:[%s1 + $0x50] sm:$0xff]
    %v34 = vld [vmem:[%s1 + $0x58] sm:$0xff]
    %v35 = vld [vmem:[%s1 + $0x60] sm:$0xff]
    %v36 = vld [vmem:[%s1 + $0x68] sm:$0xff]
    %v37 = vld [vmem:[%s1 + $0x70] sm:$0xff]
    %v38 = vld [vmem:[%s1 + $0x78] sm:$0xff]
    %v39 = vld [vmem:[%s1 + $0x80] sm:$0xff]
    %v40 = vld [vmem:[%s1 + $0x88] sm:$0xff]
    %v41 = vld [vmem:[%s1 + $0x90] sm:$0xff]
    %v42 = vld [vmem:[%s1 + $0x98] sm:$0xff]
    %v43 = vld [vmem:[%s1 + $0xa0] sm:$0xff]
    %v44 = vld [vmem:[%s1 + $0xa8] sm:$0xff]
    %v45 = vld [vmem:[%s1 + $0xb0] sm:$0xff]
    %v46 = vld [vmem:[%s1 + $0xb8] sm:$0xff]
    %v47 = vld [vmem:[%s1 + $0xc0] sm:$0xff]
    %v48 = vld [vmem:[%s1 + $0xc8] sm:$0xff]
    %v49 = vld [vmem:[%s1 + $0xd0] sm:$0xff]
    %v50 = vld [vmem:[%s1 + $0xd8] sm:$0xff]
    %v51 = vld [vmem:[%s1 + $0xe0] sm:$0xff]
    %v52 = vld [vmem:[%s1 + $0xe8] sm:$0xff]
    %v53 = vld [vmem:[%s1 + $0xf0] sm:$0xff]
    %v54 = vld [vmem:[%s1 + $0xf8] sm:$0xff]
    %v55 = vld [vmem:[%s1 + $0x100] sm:$0xff]
    %v56 = vld [vmem:[%s1 + $0x108] sm:$0xff]
    %v57 = vld [vmem:[%s1 + $0x110] sm:$0xff]
    %v58 = vld [vmem:[%s1 + $0x118] sm:$0xff]
    %v59 = vld [vmem:[%s1 + $0x120] sm:$0xff]
    %v60 = vld [vmem:[%s1 + $0x128] sm:$0xff]
    %v61 = vld [vmem:[%s1 + $0x130] sm:$0xff]
    %v62 = vld [vmem:[%s1 + $0x138] sm:$0xff]
    %v63 = vld [vmem:[%s1 + $0x140] sm:$0xff]
    %v64 = vld [vmem:[%s1 + $0x148] sm:$0xff]
    %v65 = vld [vmem:[%s1 + $0x150] sm:$0xff]
    %v66 = vld [vmem:[%s1 + $0x158] sm:$0xff]
    %v67 = vld [vmem:[%s1 + $0x160] sm:$0xff]
    %v68 = vld [vmem:[%s1 + $0x168] sm:$0xff]
    %v69 = vld [vmem:[%s1 + $0x170] sm:$0xff]
    %v70 = vld [vmem:[%s1 + $0x178] sm:$0xff]
    %v71 = vld [vmem:[%s2] sm:$0x7]
    %v73 = vlaneseq
    %v74 = vshrl.u32 %v73, 7
    %v75 = vsub.s32 0, %v74
    %v76 = vrot.slane %v71, %v75
    %v77 = vlaneseq
    %v78 = vshrl.u32 %v77, 7
    %v79 = vsub.s32 1, %v78
    %v80 = vrot.slane %v71, %v79
    %v81 = vlaneseq
    %v82 = vshrl.u32 %v81, 7
    %v83 = vsub.s32 2, %v82
    %v84 = vrot.slane %v71, %v83
    %88 = vmatprep.subr.mxu0 %v24
    %89 = vmatpush1.msra.mxu0 %v23
    %90 = vmatprep.subr.mxu0 %v27
    %91 = vmatpush1.msra.mxu0 %v26
    %92 = vmatprep.subr.mxu0 %v30
    %93 = vmatpush1.msra.mxu0 %v29
    %94 = vmatprep.subr.mxu0 %v33
    %95 = vmatpush1.msra.mxu0 %v32
    %96 = vmatprep.subr.mxu0 %v36
    %97 = vmatpush1.msra.mxu0 %v35
    %98 = vmatprep.subr.mxu0 %v39
    %99 = vmatpush1.msra.mxu0 %v38
    %100 = vmatprep.subr.mxu0 %v42
    %101 = vmatpush1.msra.mxu0 %v41
    %102 = vmatprep.subr.mxu0 %v45
    %103 = vmatpush1.msra.mxu0 %v44
    %104 = vmatprep.subr.mxu0 %v48
    %105 = vmatpush1.msra.mxu0 %v47
    %106 = vmatprep.subr.mxu0 %v51
    %107 = vmatpush1.msra.mxu0 %v50
    %108 = vmatprep.subr.mxu0 %v54
    %109 = vmatpush1.msra.mxu0 %v53
    %110 = vmatprep.subr.mxu0 %v57
    %111 = vmatpush1.msra.mxu0 %v56
    %112 = vmatprep.subr.mxu0 %v60
    %113 = vmatpush1.msra.mxu0 %v59
    %114 = vmatprep.subr.mxu0 %v63
    %115 = vmatpush1.msra.mxu0 %v62
    %116 = vmatprep.subr.mxu0 %v66
    %117 = vmatpush1.msra.mxu0 %v65
    %118 = vmatprep.subr.mxu0 %v69
    %119 = vmatpush1.msra.mxu0 %v68
    %120 = vmatprep.subr.mxu0 0.0
    %121 = vmatpush1.msra.mxu0 0.0
    %122 = vmatprep.subr.mxu0 0.0
    %123 = vmatpush1.msra.mxu0 0.0
    %124 = vmatprep.subr.mxu0 0.0
    %125 = vmatpush1.msra.mxu0 0.0
    %126 = vmatprep.subr.mxu0 0.0
    %127 = vmatpush1.msra.mxu0 0.0
    %128 = vmatprep.subr.mxu0 0.0
    %129 = vmatpush1.msra.mxu0 0.0
    %130 = vmatprep.subr.mxu0 0.0
    %131 = vmatpush1.msra.mxu0 0.0
    %132 = vmatprep.subr.mxu0 0.0
    %133 = vmatpush1.msra.mxu0 0.0
    %134 = vmatprep.subr.mxu0 0.0
    %135 = vmatpush1.msra.mxu0 0.0
    %136 = vmatprep.subr.mxu0 0.0
    %137 = vmatpush1.msra.mxu0 0.0
    %138 = vmatprep.subr.mxu0 0.0
    %139 = vmatpush1.msra.mxu0 0.0
    %140 = vmatprep.subr.mxu0 0.0
    %141 = vmatpush1.msra.mxu0 0.0
    %142 = vmatprep.subr.mxu0 0.0
    %143 = vmatpush1.msra.mxu0 0.0
    %144 = vmatprep.subr.mxu0 0.0
    %145 = vmatpush1.msra.mxu0 0.0
    %146 = vmatprep.subr.mxu0 0.0
    %147 = vmatpush1.msra.mxu0 0.0
    %148 = vmatprep.subr.mxu0 0.0
    %149 = vmatpush1.msra.mxu0 0.0
    %150 = vmatprep.subr.mxu0 0.0
    %151 = vmatpush1.msra.mxu0 0.0
    %152 = vmatprep.mubr.f32.mxu0 0.0
    %153 = vmatmul.mubr.f32.gmra.mrb[0].mxu0 %v21
    %v154 = vpop.f32.mrb[0].mxu0
    %v155 = vadd.f32 %v76, %v154
    %v156 = vpop.f32.mrb[0].mxu0
    %v157 = vadd.f32 %v80, %v156
    %158 = vmatprep.mubr.f32.mxu0 0.0
    %159 = vmatmul.mubr.f32.gmra.mrb[0].mxu0 %v22
    %v160 = vpop.f32.mrb[0].mxu0
    %v161 = vadd.f32 %v76, %v160
    %v162 = vpop.f32.mrb[0].mxu0
    %v163 = vadd.f32 %v80, %v162
    %164 = vdwg.mxu0
    %165 = vmatprep.subr.mxu0 0.0
    %166 = vmatpush1.msra.mxu0 %v25
    %167 = vmatprep.subr.mxu0 0.0
    %168 = vmatpush1.msra.mxu0 %v28
    %169 = vmatprep.subr.mxu0 0.0
    %170 = vmatpush1.msra.mxu0 %v31
    %171 = vmatprep.subr.mxu0 0.0
    %172 = vmatpush1.msra.mxu0 %v34
    %173 = vmatprep.subr.mxu0 0.0
    %174 = vmatpush1.msra.mxu0 %v37
    %175 = vmatprep.subr.mxu0 0.0
    %176 = vmatpush1.msra.mxu0 %v40
    %177 = vmatprep.subr.mxu0 0.0
    %178 = vmatpush1.msra.mxu0 %v43
    %179 = vmatprep.subr.mxu0 0.0
    %180 = vmatpush1.msra.mxu0 %v46
    %181 = vmatprep.subr.mxu0 0.0
    %182 = vmatpush1.msra.mxu0 %v49
    %183 = vmatprep.subr.mxu0 0.0
    %184 = vmatpush1.msra.mxu0 %v52
    %185 = vmatprep.subr.mxu0 0.0
    %186 = vmatpush1.msra.mxu0 %v55
    %187 = vmatprep.subr.mxu0 0.0
    %188 = vmatpush1.msra.mxu0 %v58
    %189 = vmatprep.subr.mxu0 0.0
    %190 = vmatpush1.msra.mxu0 %v61
    %191 = vmatprep.subr.mxu0 0.0
    %192 = vmatpush1.msra.mxu0 %v64
    %193 = vmatprep.subr.mxu0 0.0
    %194 = vmatpush1.msra.mxu0 %v67
    %195 = vmatprep.subr.mxu0 0.0
    %196 = vmatpush1.msra.mxu0 %v70
    %197 = vmatprep.subr.mxu0 0.0
    %198 = vmatpush1.msra.mxu0 0.0
    %199 = vmatprep.subr.mxu0 0.0
    %200 = vmatpush1.msra.mxu0 0.0
    %201 = vmatprep.subr.mxu0 0.0
    %202 = vmatpush1.msra.mxu0 0.0
    %203 = vmatprep.subr.mxu0 0.0
    %204 = vmatpush1.msra.mxu0 0.0
    %205 = vmatprep.subr.mxu0 0.0
    %206 = vmatpush1.msra.mxu0 0.0
    %207 = vmatprep.subr.mxu0 0.0
    %208 = vmatpush1.msra.mxu0 0.0
    %209 = vmatprep.subr.mxu0 0.0
    %210 = vmatpush1.msra.mxu0 0.0
    %211 = vmatprep.subr.mxu0 0.0
    %212 = vmatpush1.msra.mxu0 0.0
    %213 = vmatprep.subr.mxu0 0.0
    %214 = vmatpush1.msra.mxu0 0.0
    %215 = vmatprep.subr.mxu0 0.0
    %216 = vmatpush1.msra.mxu0 0.0
    %217 = vmatprep.subr.mxu0 0.0
    %218 = vmatpush1.msra.mxu0 0.0
    %219 = vmatprep.subr.mxu0 0.0
    %220 = vmatpush1.msra.mxu0 0.0
    %221 = vmatprep.subr.mxu0 0.0
    %222 = vmatpush1.msra.mxu0 0.0
    %223 = vmatprep.subr.mxu0 0.0
    %224 = vmatpush1.msra.mxu0 0.0
    %225 = vmatprep.subr.mxu0 0.0
    %226 = vmatpush1.msra.mxu0 0.0
    %227 = vmatprep.subr.mxu0 0.0
    %228 = vmatpush1.msra.mxu0 0.0
    %229 = vmatprep.mubr.f32.mxu0 0.0
    %230 = vmatmul.mubr.f32.gmra.mrb[0].mxu0 %v21
    %v231 = vpop.f32.mrb[0].mxu0
    %v232 = vadd.f32 %v84, %v231
    %v233 = vpop.f32.mrb[0].mxu0
    %234 = vmatprep.mubr.f32.mxu0 0.0
    %235 = vmatmul.mubr.f32.gmra.mrb[0].mxu0 %v22
    %v236 = vpop.f32.mrb[0].mxu0
    %v237 = vadd.f32 %v84, %v236
    %v238 = vpop.f32.mrb[0].mxu0
    %239 = vdwg.mxu0
    %v240 = vmax.f32 %v155, 0.0
    %v241 = vmax.f32 %v157, 0.0
    %v242 = vmax.f32 %v232, 0.0
    %v243 = vmax.f32 %v161, 0.0
    %v244 = vmax.f32 %v163, 0.0
    %v245 = vmax.f32 %v237, 0.0
    %v246 = vld [vmem:[%s3] sm:$0xff]
    %v247 = vld [vmem:[%s3 + $0x8] sm:$0xff]
    %v248 = vld [vmem:[%s3 + $0x10] sm:$0xff]
    %v249 = vld [vmem:[%s3 + $0x18] sm:$0xff]
    %v250 = vld [vmem:[%s3 + $0x20] sm:$0xff]
    %v251 = vld [vmem:[%s3 + $0x28] sm:$0xff]
    %v252 = vld [vmem:[%s3 + $0x30] sm:$0xff]
    %v253 = vld [vmem:[%s3 + $0x38] sm:$0xff]
    %v254 = vld [vmem:[%s3 + $0x40] sm:$0xff]
    %v255 = vld [vmem:[%s3 + $0x48] sm:$0xff]
    %v256 = vld [vmem:[%s3 + $0x50] sm:$0xff]
    %v257 = vld [vmem:[%s3 + $0x58] sm:$0xff]
    %v258 = vld [vmem:[%s3 + $0x60] sm:$0xff]
    %v259 = vld [vmem:[%s3 + $0x68] sm:$0xff]
    %v260 = vld [vmem:[%s3 + $0x70] sm:$0xff]
    %v261 = vld [vmem:[%s3 + $0x78] sm:$0xff]
    %v262 = vld [vmem:[%s3 + $0x80] sm:$0xff]
    %v263 = vld [vmem:[%s3 + $0x88] sm:$0xff]
    %v264 = vld [vmem:[%s3 + $0x90] sm:$0xff]
    %v265 = vld [vmem:[%s3 + $0x98] sm:$0xff]
    %v266 = vld [vmem:[%s3 + $0xa0] sm:$0xff]
    %v267 = vld [vmem:[%s3 + $0xa8] sm:$0xff]
    %v268 = vld [vmem:[%s3 + $0xb0] sm:$0xff]
    %v269 = vld [vmem:[%s3 + $0xb8] sm:$0xff]
    %v270 = vld [vmem:[%s3 + $0xc0] sm:$0xff]
    %v271 = vld [vmem:[%s3 + $0xc8] sm:$0xff]
    %v272 = vld [vmem:[%s3 + $0xd0] sm:$0xff]
    %v273 = vld [vmem:[%s3 + $0xd8] sm:$0xff]
    %v274 = vld [vmem:[%s3 + $0xe0] sm:$0xff]
    %v275 = vld [vmem:[%s3 + $0xe8] sm:$0xff]
    %v276 = vld [vmem:[%s3 + $0xf0] sm:$0xff]
    %v277 = vld [vmem:[%s3 + $0xf8] sm:$0xff]
    %v278 = vld [vmem:[%s3 + $0x100] sm:$0xff]
    %v279 = vld [vmem:[%s3 + $0x108] sm:$0xff]
    %v280 = vld [vmem:[%s3 + $0x110] sm:$0xff]
    %v281 = vld [vmem:[%s3 + $0x118] sm:$0xff]
    %v282 = vld [vmem:[%s3 + $0x120] sm:$0xff]
    %v283 = vld [vmem:[%s3 + $0x128] sm:$0xff]
    %v284 = vld [vmem:[%s3 + $0x130] sm:$0xff]
    %v285 = vld [vmem:[%s3 + $0x138] sm:$0xff]
    %v286 = vld [vmem:[%s4] sm:$0x1]
    %v288 = vlaneseq
    %v289 = vshrl.u32 %v288, 7
    %v290 = vsub.s32 0, %v289
    %v291 = vrot.slane %v286, %v290
    %vm293 = vcmask 523264
    %v295 = vsel %vm293, %v242, 0
    %v298 = vsel %vm293, %v245, 0
    %300 = vmatprep.subr.mxu0 0.0
    %301 = vmatpush1.msra.mxu0 %v246
    %302 = vmatprep.subr.mxu0 0.0
    %303 = vmatpush1.msra.mxu0 %v247
    %304 = vmatprep.subr.mxu0 0.0
    %305 = vmatpush1.msra.mxu0 %v248
    %306 = vmatprep.subr.mxu0 0.0
    %307 = vmatpush1.msra.mxu0 %v249
    %308 = vmatprep.subr.mxu0 0.0
    %309 = vmatpush1.msra.mxu0 %v250
    %310 = vmatprep.subr.mxu0 0.0
    %311 = vmatpush1.msra.mxu0 %v251
    %312 = vmatprep.subr.mxu0 0.0
    %313 = vmatpush1.msra.mxu0 %v252
    %314 = vmatprep.subr.mxu0 0.0
    %315 = vmatpush1.msra.mxu0 %v253
    %316 = vmatprep.subr.mxu0 0.0
    %317 = vmatpush1.msra.mxu0 %v254
    %318 = vmatprep.subr.mxu0 0.0
    %319 = vmatpush1.msra.mxu0 %v255
    %320 = vmatprep.subr.mxu0 0.0
    %321 = vmatpush1.msra.mxu0 %v256
    %322 = vmatprep.subr.mxu0 0.0
    %323 = vmatpush1.msra.mxu0 %v257
    %324 = vmatprep.subr.mxu0 0.0
    %325 = vmatpush1.msra.mxu0 %v258
    %326 = vmatprep.subr.mxu0 0.0
    %327 = vmatpush1.msra.mxu0 %v259
    %328 = vmatprep.subr.mxu0 0.0
    %329 = vmatpush1.msra.mxu0 %v260
    %330 = vmatprep.subr.mxu0 0.0
    %331 = vmatpush1.msra.mxu0 %v261
    %332 = vmatprep.subr.mxu0 0.0
    %333 = vmatpush1.msra.mxu0 %v262
    %334 = vmatprep.subr.mxu0 0.0
    %335 = vmatpush1.msra.mxu0 %v263
    %336 = vmatprep.subr.mxu0 0.0
    %337 = vmatpush1.msra.mxu0 %v264
    %338 = vmatprep.subr.mxu0 0.0
    %339 = vmatpush1.msra.mxu0 %v265
    %340 = vmatprep.subr.mxu0 0.0
    %341 = vmatpush1.msra.mxu0 %v266
    %342 = vmatprep.subr.mxu0 0.0
    %343 = vmatpush1.msra.mxu0 %v267
    %344 = vmatprep.subr.mxu0 0.0
    %345 = vmatpush1.msra.mxu0 %v268
    %346 = vmatprep.subr.mxu0 0.0
    %347 = vmatpush1.msra.mxu0 %v269
    %348 = vmatprep.subr.mxu0 0.0
    %349 = vmatpush1.msra.mxu0 %v270
    %350 = vmatprep.subr.mxu0 0.0
    %351 = vmatpush1.msra.mxu0 %v271
    %352 = vmatprep.subr.mxu0 0.0
    %353 = vmatpush1.msra.mxu0 %v272
    %354 = vmatprep.subr.mxu0 0.0
    %355 = vmatpush1.msra.mxu0 %v273
    %356 = vmatprep.subr.mxu0 0.0
    %357 = vmatpush1.msra.mxu0 %v274
    %358 = vmatprep.subr.mxu0 0.0
    %359 = vmatpush1.msra.mxu0 %v275
    %360 = vmatprep.subr.mxu0 0.0
    %361 = vmatpush1.msra.mxu0 %v276
    %362 = vmatprep.subr.mxu0 0.0
    %363 = vmatpush1.msra.mxu0 %v277
    %364 = vmatprep.mubr.f32.mxu0 %v241
    %365 = vmatmul.mubr.f32.gmra.mrb[0].mxu0 %v240
    %v366 = vpop.f32.mrb[0].mxu0
    %v367 = vadd.f32 %v291, %v366
    %v368 = vpop.f32.mrb[0].mxu0
    %369 = vmatprep.mubr.f32.mxu0 %v244
    %370 = vmatmul.mubr.f32.gmra.mrb[0].mxu0 %v243
    %v371 = vpop.f32.mrb[0].mxu0
    %v372 = vadd.f32 %v291, %v371
    %v373 = vpop.f32.mrb[0].mxu0
    %374 = vdwg.mxu0
    %375 = vmatprep.subr.mxu0 0.0
    %376 = vmatpush1.msra.mxu0 %v278
    %377 = vmatprep.subr.mxu0 0.0
    %378 = vmatpush1.msra.mxu0 %v279
    %379 = vmatprep.subr.mxu0 0.0
    %380 = vmatpush1.msra.mxu0 %v280
    %381 = vmatprep.subr.mxu0 0.0
    %382 = vmatpush1.msra.mxu0 %v281
    %383 = vmatprep.subr.mxu0 0.0
    %384 = vmatpush1.msra.mxu0 %v282
    %385 = vmatprep.subr.mxu0 0.0
    %386 = vmatpush1.msra.mxu0 %v283
    %387 = vmatprep.subr.mxu0 0.0
    %388 = vmatpush1.msra.mxu0 %v284
    %389 = vmatprep.subr.mxu0 0.0
    %390 = vmatpush1.msra.mxu0 %v285
    %391 = vmatprep.subr.mxu0 0.0
    %392 = vmatpush1.msra.mxu0 0.0
    %393 = vmatprep.subr.mxu0 0.0
    %394 = vmatpush1.msra.mxu0 0.0
    %395 = vmatprep.subr.mxu0 0.0
    %396 = vmatpush1.msra.mxu0 0.0
    %397 = vmatprep.subr.mxu0 0.0
    %398 = vmatpush1.msra.mxu0 0.0
    %399 = vmatprep.subr.mxu0 0.0
    %400 = vmatpush1.msra.mxu0 0.0
    %401 = vmatprep.subr.mxu0 0.0
    %402 = vmatpush1.msra.mxu0 0.0
    %403 = vmatprep.subr.mxu0 0.0
    %404 = vmatpush1.msra.mxu0 0.0
    %405 = vmatprep.subr.mxu0 0.0
    %406 = vmatpush1.msra.mxu0 0.0
    %407 = vmatprep.subr.mxu0 0.0
    %408 = vmatpush1.msra.mxu0 0.0
    %409 = vmatprep.subr.mxu0 0.0
    %410 = vmatpush1.msra.mxu0 0.0
    %411 = vmatprep.subr.mxu0 0.0
    %412 = vmatpush1.msra.mxu0 0.0
    %413 = vmatprep.subr.mxu0 0.0
    %414 = vmatpush1.msra.mxu0 0.0
    %415 = vmatprep.subr.mxu0 0.0
    %416 = vmatpush1.msra.mxu0 0.0
    %417 = vmatprep.subr.mxu0 0.0
    %418 = vmatpush1.msra.mxu0 0.0
    %419 = vmatprep.subr.mxu0 0.0
    %420 = vmatpush1.msra.mxu0 0.0
    %421 = vmatprep.subr.mxu0 0.0
    %422 = vmatpush1.msra.mxu0 0.0
    %423 = vmatprep.subr.mxu0 0.0
    %424 = vmatpush1.msra.mxu0 0.0
    %425 = vmatprep.subr.mxu0 0.0
    %426 = vmatpush1.msra.mxu0 0.0
    %427 = vmatprep.subr.mxu0 0.0
    %428 = vmatpush1.msra.mxu0 0.0
    %429 = vmatprep.subr.mxu0 0.0
    %430 = vmatpush1.msra.mxu0 0.0
    %431 = vmatprep.subr.mxu0 0.0
    %432 = vmatpush1.msra.mxu0 0.0
    %433 = vmatprep.subr.mxu0 0.0
    %434 = vmatpush1.msra.mxu0 0.0
    %435 = vmatprep.subr.mxu0 0.0
    %436 = vmatpush1.msra.mxu0 0.0
    %437 = vmatprep.subr.mxu0 0.0
    %438 = vmatpush1.msra.mxu0 0.0
    %439 = vmatprep.mubr.f32.mxu0 0.0
    %440 = vmatmul.mubr.f32.gmra.mrb[0].mxu0 %v295
    %v441 = vpop.f32.mrb[0].mxu0
    %v442 = vadd.f32 %v367, %v441
    %v443 = vpop.f32.mrb[0].mxu0
    %444 = vmatprep.mubr.f32.mxu0 0.0
    %445 = vmatmul.mubr.f32.gmra.mrb[0].mxu0 %v298
    %v446 = vpop.f32.mrb[0].mxu0
    %v447 = vadd.f32 %v372, %v446
    %v448 = vpop.f32.mrb[0].mxu0
    %449 = vdwg.mxu0
    %v450 = vmax.f32 %v442, 0.0
    %v451 = vmax.f32 %v447, 0.0
    %v452 = vand.u32 2147483647, %v442
    %v453 = vand.u32 2147483647, %v447
    %v454 = vsub.f32 0.0, %v452
    %v455 = vsub.f32 0.0, %v453
    %v456 = vmul.f32 %v454, 1.442695
    %v457 = vpow.pop %v456
    %v458 = vmul.f32 %v455, 1.442695
    %v459 = vpow.pop %v458
    %v460 = vadd.f32 %v457, 1.0
    %v461 = vadd.f32 %v459, 1.0
    %v462 = vlog2.pop %v460
    %v463 = vmul.f32 %v462, 0.6931472
    %v464 = vlog2.pop %v461
    %v465 = vmul.f32 %v464, 0.6931472
    %v466 = vadd.f32 %v450, %v463
    %v467 = vadd.f32 %v451, %v465
    %v468 = vlaneseq
    %v469 = vand.u32 %v468, 127
    %v470 = vand.u32 %v469, 1
    %vm471 = vcmp.eq.s32.totalorder %v470, 0
    %v472 = vsub.f32 %v442, %v466
    %v473 = vsub.f32 %v447, %v467
    %v474 = vsub.f32 0.0, %v466
    %v475 = vsub.f32 0.0, %v467
    %v476 = vsel %vm471, %v472, %v474
    %v477 = vsel %vm471, %v473, %v475
    %478 = vst.msk [vmem:[#allocation2] sm:$0xff] %vm293, %v476
    %479 = vst.msk [vmem:[#allocation2 + $0x8] sm:$0xff] %vm293, %v477
    // Predicated region
    $region22: #{tpu_custom_call.1} parent=1 // pred_check
      _
    $region23: #{tpu_custom_call.1} parent=1 // pred_check_branch
      %481 = sbr.rel (0) target = $region25
    $region24: #{tpu_custom_call.1} parent=1 // pred_region
      %s483 = ssub.s32 256, 256
      %484 = vsyncadd [#allocation3], %s483
      %s485 = sshll.u32 [#allocation2], 4
      %s486 = int_to_ptr.vmem [resolvable:$true] %s485
      %491 = dma.vmem_to_hbm [thread:$0]  %s486, 256, %s5, [#allocation3], 128, 128, 8
    $region25: #{tpu_custom_call.1} parent=1 // pred_fallthru
      _
    // Predicated region
    $region26: #{tpu_custom_call.1} parent=1 // pred_check
      _
    $region27: #{tpu_custom_call.1} parent=1 // pred_check_branch
      %493 = sbr.rel (0) target = $region29
    $region28: #{tpu_custom_call.1} parent=1 // pred_region
      %494 = dma.done [#allocation3], 256
    $region29: #{tpu_custom_call.1} parent=1 // pred_fallthru
      _
    %495 = vsyncpa [#allocation3], 1

</llo_original>
